<compile_context>
chip_gen: v7x
topology: tpu7x:2x2x1
jax: 0.10.0
libtpu: 0.0.40
codegen_flags: <defaults>
</compile_context>

<pallas_src>
import numpy as np
import jax
import jax.numpy as jnp
from jax.experimental import pallas as pl
from jax.experimental.pallas import tpu as pltpu

NEG_SLOPE = 0.01  # nn.LeakyReLU default negative_slope


def torgb_kernel(wmod_ref, bias_ref, x_ref, o_ref):
    # wmod_ref: (1, 3, C)        per-batch style-modulated 1x1 conv weight
    # bias_ref: (3, 1)           output bias (pre-scaled)
    # x_ref:    (1, C, TILE_HW)  feature tile for the current batch element
    # o_ref:    (1, 3, TILE_HW)
    y = jnp.dot(wmod_ref[0], x_ref[0], preferred_element_type=jnp.float32)
    y = y + bias_ref[...]
    o_ref[0] = jnp.where(y >= 0, y, NEG_SLOPE * y).astype(o_ref.dtype)


def _pick_tile_hw(hw, c, dtype_bytes=4, max_block_bytes=8 << 20):
    """Largest multiple of 128 that divides HW and keeps the x block <= ~8 MiB."""
    if hw % 128 != 0:
        # Fall back to a single full-spatial block (block dim == array dim is
        # always a valid BlockSpec).
        return hw
    cap = max(128, (max_block_bytes // (dtype_bytes * c)) // 128 * 128)
    tile = min(hw, cap)
    while hw % tile != 0:
        tile -= 128
    return tile


def to_rgb(x_nchw, w, params):
    B, C, H, W = x_nchw.shape
    HW = H * W

    # --- glue in plain JAX: style vector + weight folding (tiny tensors) ---
    Ws = params["style_w"] * params["style_scale"]                 # (C, w_dim)
    bs = params["style_b"] * params["style_bias_scale"]            # (C,)
    s = w @ Ws.T + bs                                              # (B, C)
    s = jnp.where(s >= 0, s, NEG_SLOPE * s)

    Wc = params["conv_w"] * params["conv_scale"]                   # (3, C)
    w_mod = Wc[None, :, :] * s[:, None, :]                         # (B, 3, C)
    bc = (params["out_b"] * params["out_bias_scale"]).reshape(3, 1)

    # NCHW -> (B, C, HW): free reshape (channels-first preserved, no transpose).
    x_flat = x_nchw.reshape(B, C, HW)

    tile_hw = _pick_tile_hw(HW, C)
    grid = (B, HW // tile_hw)

    out_flat = pl.pallas_call(
        torgb_kernel,
        out_shape=jax.ShapeDtypeStruct((B, 3, HW), jnp.float32),
        grid_spec=pltpu.PrefetchScalarGridSpec(
            num_scalar_prefetch=0,
            grid=grid,
            in_specs=[
                pl.BlockSpec((1, 3, C), lambda b, t: (b, 0, 0)),        # W_mod[b]
                pl.BlockSpec((3, 1), lambda b, t: (0, 0)),              # bias
                pl.BlockSpec((1, C, tile_hw), lambda b, t: (b, 0, t)),  # x tile
            ],
            out_specs=pl.BlockSpec((1, 3, tile_hw), lambda b, t: (b, 0, t)),
        ),
        compiler_params=pltpu.CompilerParams(
            dimension_semantics=("parallel", "parallel"),
            vmem_limit_bytes=64 * 1024 * 1024,
        ),
    )(w_mod, bc, x_flat)

    # (B, 3, HW) -> NCHW: free reshape.
    return out_flat.reshape(B, 3, H, W)


def ref_to_rgb(x, w, params):
    """Pure-JAX reference mirroring the PyTorch forward exactly."""
    Ws = params["style_w"] * params["style_scale"]
    bs = params["style_b"] * params["style_bias_scale"]
    s = w @ Ws.T + bs
    s = jnp.where(s >= 0, s, NEG_SLOPE * s)
    Wc = params["conv_w"] * params["conv_scale"]                   # (3, C)
    y = jnp.einsum("bchw,oc->bohw", x * s[:, :, None, None], Wc)
    y = y + (params["out_b"] * params["out_bias_scale"])[None, :, None, None]
    return jnp.where(y >= 0, y, NEG_SLOPE * y)


if __name__ == "__main__":
    B, C_in, H, W = 2, 4, 16, 16
    w_dim = 8
    lr_multiplier = 1.0

    key = jax.random.PRNGKey(0)
    k_x, k_w, k_sw, k_cw = jax.random.split(key, 4)

    x = jax.random.normal(k_x, (B, C_in, H, W), dtype=jnp.float32)
    w = jax.random.normal(k_w, (B, w_dim), dtype=jnp.float32)

    params = {
        # EqualizedLinear(w_dim -> in_channels), bias_init=1
        "style_w": jax.random.normal(k_sw, (C_in, w_dim), dtype=jnp.float32) / lr_multiplier,
        "style_scale": jnp.float32(lr_multiplier / np.sqrt(w_dim)),
        "style_b": jnp.full((C_in,), 1.0, dtype=jnp.float32),
        "style_bias_scale": jnp.float32(lr_multiplier),
        # EqualizedConv2dModulated(in_channels -> 3, k=1), weight squeezed to (3, C)
        "conv_w": jax.random.normal(k_cw, (3, C_in), dtype=jnp.float32) / lr_multiplier,
        "conv_scale": jnp.float32(lr_multiplier / np.sqrt(C_in * 1 * 1)),
        # ToRGB bias, bias_init=0
        "out_b": jnp.full((3,), 0.0, dtype=jnp.float32),
        "out_bias_scale": jnp.float32(lr_multiplier),
    }

    out = jax.block_until_ready(to_rgb(x, w, params))
    ref = jax.block_until_ready(ref_to_rgb(x, w, params))

    assert out.shape == (B, 3, H, W), out.shape
    np.testing.assert_allclose(np.asarray(out), np.asarray(ref), atol=1e-4, rtol=1e-4)
    print("KERNEL_OK")
</pallas_src>

<mosaic_0001>
module attributes {stable_mosaic.version = 11 : i64} {
  func.func @torgb_kernel(%arg0: i32, %arg1: i32, %arg2: memref<1x3x4xf32, #tpu.memory_space<vmem>>, %arg3: memref<3x1xf32, #tpu.memory_space<vmem>>, %arg4: memref<1x4x256xf32, #tpu.memory_space<vmem>>, %arg5: memref<1x3x256xf32, #tpu.memory_space<vmem>>) attributes {dimension_semantics = [#tpu.dimension_semantics<parallel>, #tpu.dimension_semantics<parallel>], iteration_bounds = array<i64: 2, 1>, scalar_prefetch = 0 : i64, scratch_operands = 0 : i64, tpu.core_type = #tpu.core_type<tc>, window_params = [{transform_indices = @transform_0, window_bounds = array<i64: 1, 3, 4>}, {pipeline_mode = #tpu.pipeline_mode<synchronous>, transform_indices = @transform_1, window_bounds = array<i64: 3, 1>}, {transform_indices = @transform_2, window_bounds = array<i64: 1, 4, 256>}, {transform_indices = @transform_3, window_bounds = array<i64: 1, 3, 256>}]} {
    %c0 = arith.constant 0 : index
    %c0_0 = arith.constant 0 : index
    %c0_1 = arith.constant 0 : index
    %0 = vector.load %arg2[%c0, %c0_0, %c0_1] : memref<1x3x4xf32, #tpu.memory_space<vmem>>, vector<1x3x4xf32>
    %1 = vector.shape_cast %0 : vector<1x3x4xf32> to vector<3x4xf32>
    %c0_2 = arith.constant 0 : index
    %c0_3 = arith.constant 0 : index
    %c0_4 = arith.constant 0 : index
    %2 = vector.load %arg4[%c0_2, %c0_3, %c0_4] : memref<1x4x256xf32, #tpu.memory_space<vmem>>, vector<1x4x256xf32>
    %3 = vector.shape_cast %2 : vector<1x4x256xf32> to vector<4x256xf32>
    %cst = arith.constant dense<0.000000e+00> : vector<3x256xf32>
    %4 = tpu.matmul %1, %3, %cst {dimension_numbers = #tpu.dot_dimension_numbers<[1], [0], [0], [1], [0, 0, 1, 1], [], []>} : vector<3x4xf32>, vector<4x256xf32>, vector<3x256xf32> -> vector<3x256xf32>
    %c0_5 = arith.constant 0 : index
    %c0_6 = arith.constant 0 : index
    %5 = vector.load %arg3[%c0_5, %c0_6] : memref<3x1xf32, #tpu.memory_space<vmem>>, vector<3x1xf32>
    %6 = vector.broadcast %5 : vector<3x1xf32> to vector<3x256xf32>
    %7 = arith.addf %4, %6 : vector<3x256xf32>
    %cst_7 = arith.constant 0.000000e+00 : f32
    %8 = vector.broadcast %cst_7 : f32 to vector<3x256xf32>
    %9 = arith.cmpf oge, %7, %8 : vector<3x256xf32>
    %cst_8 = arith.constant 0.00999999977 : f32
    %10 = vector.broadcast %cst_8 : f32 to vector<3x256xf32>
    %11 = arith.mulf %10, %7 : vector<3x256xf32>
    %12 = arith.select %9, %7, %11 : vector<3x256xi1>, vector<3x256xf32>
    %c0_9 = arith.constant 0 : index
    %c0_10 = arith.constant 0 : index
    %c0_11 = arith.constant 0 : index
    %13 = vector.load %arg5[%c0_9, %c0_10, %c0_11] : memref<1x3x256xf32, #tpu.memory_space<vmem>>, vector<1x3x256xf32>
    %14 = vector.shape_cast %13 : vector<1x3x256xf32> to vector<3x256xf32>
    %15 = vector.shape_cast %12 : vector<3x256xf32> to vector<1x3x256xf32>
    tpu.vector_store %arg5[%c0_9, %c0_10, %c0_11], %15 {strides = array<i32>} : memref<1x3x256xf32, #tpu.memory_space<vmem>>, vector<1x3x256xf32>,
    return
  }
  func.func @transform_0(%arg0: i32, %arg1: i32) -> (i32, i32, i32) {
    %c0_i32 = arith.constant 0 : i32
    %c0_i32_0 = arith.constant 0 : i32
    %c0_i32_1 = arith.constant 0 : i32
    return %arg0, %c0_i32, %c0_i32_0 : i32, i32, i32
  }
  func.func @transform_1(%arg0: i32, %arg1: i32) -> (i32, i32) {
    %c0_i32 = arith.constant 0 : i32
    %c0_i32_0 = arith.constant 0 : i32
    %c0_i32_1 = arith.constant 0 : i32
    return %c0_i32, %c0_i32_0 : i32, i32
  }
  func.func @transform_2(%arg0: i32, %arg1: i32) -> (i32, i32, i32) {
    %c0_i32 = arith.constant 0 : i32
    %c0_i32_0 = arith.constant 0 : i32
    return %arg0, %c0_i32, %arg1 : i32, i32, i32
  }
  func.func @transform_3(%arg0: i32, %arg1: i32) -> (i32, i32, i32) {
    %c0_i32 = arith.constant 0 : i32
    %c0_i32_0 = arith.constant 0 : i32
    return %arg0, %c0_i32, %arg1 : i32, i32, i32
  }
}

</mosaic_0001>

<llo_original>
// kernel: tpu_custom_call.1
$region0: #{tpu_custom_call.1}
  #allocation0 [shape = 'u32[]', space=smem, size = 0x4, offset = 0x4, fixed_abs, tag = 'smem constant byte address 0x4 - core index']
  #allocation1 [shape = 'u32[144,128]{1,0:T(1,128)}', space=vmem, size = 0x12000, scoped, tag = 'internal scratch']
  %s0 = inlined_call_operand.hbm [shape: f32[2,3,4], index: 0, kind: input, shape index: {}]
  %s1 = inlined_call_operand.hbm [shape: f32[3,1], index: 1, kind: input, shape index: {}]
  %s2 = inlined_call_operand.hbm [shape: f32[2,4,256], index: 2, kind: input, shape index: {}]
  %s3 = inlined_call_operand.hbm [shape: f32[2,3,256], index: 3, kind: output, shape index: {}]
  %s4 = sld [smem:[#allocation0]]
  $region57: #{tpu_custom_call.1} parent=0
    _
  %s6 = ssub.s32 1, %s4
  %s7 = scalar_select 0, %s6, %s4
  $region1: #{tpu_custom_call.1} parent=0
    #allocation2 [shape = 'u8[4096]{0}', space=vmem, size = 0x1000, scoped, tag = 'input window, operand 0']
    #allocation3 [shape = 's32[2]{0}', space=sflag, size = 0x8, scoped, tag = 'scoped memory for tpu_custom_call.1']
    #allocation4 [shape = 's32[2]{0}', space=sflag, size = 0x8, scoped, tag = 'scoped memory for tpu_custom_call.1']
    #allocation5 [shape = 'u8[2048]{0}', space=vmem, size = 0x800, scoped, tag = 'input window, operand 1, single buffered']
    #allocation6 [shape = 's32[1]{0}', space=sflag, size = 0x4, scoped, tag = 'scoped memory for tpu_custom_call.1']
    #allocation7 [shape = 'u8[8192]{0}', space=vmem, size = 0x2000, scoped, tag = 'input window, operand 2']
    #allocation8 [shape = 'u8[8192]{0}', space=vmem, size = 0x2000, scoped, tag = 'output window, operand 0']
    %8 = vsyncpa [#allocation3], 0
    %s9 = scalar_lea.sflag [#allocation3], 1
    %10 = vsyncpa %s9, 0
    %11 = vsyncpa [#allocation6], 0
    %12 = vsyncpa [#allocation4], 0
    %s13 = scalar_lea.sflag [#allocation4], 1
    %14 = vsyncpa %s13, 0
    loop: start=0, step=1, limit=4
    $region2: #{tpu_custom_call.1} parent=1 // loop_pre_header
      _
    $region3: #{tpu_custom_call.1} parent=1 // loop_header
      %s16 = sphi 0, %s20
      %p17 = scmp.ge.s32.totalorder %s16, 4
      %s23 = sphi 0, %s35
      %s24 = sphi 0, %s31
      %s25 = sphi 0, %s23
      %s26 = sphi 0, %s24
      %s27 = sphi 0, %s25
      %s28 = sphi 0, %s26
      %s38 = sphi 0, %s40
      %s41 = sphi 0, %s38
      %s42 = sphi 0, %s41
      %s58 = sphi 0, %s42
      %s62 = sphi 0, %s62
      %s64 = sphi 0, %s62
      %s65 = sphi 0, %s64
      %s79 = sphi 0, %s65
      %s87 = sphi 0, %s89
      %s90 = sphi 0, %s87
      %s91 = sphi 0, %s90
      %s107 = sphi 0, %s91
      %s115 = sphi 0, %s117
      %s118 = sphi 0, %s115
      %s119 = sphi 0, %s118
      %s135 = sphi 0, %s119
    $region4: #{tpu_custom_call.1} parent=1 // loop_header_branch
      %19 = sbr.rel (%p17) target = $region8
    $region5: #{tpu_custom_call.1} parent=1 // loop_body
      %s21 = ssub.s32 %s16, 1
      %s22 = ssub.s32 %s16, 2
      %s29 = sadd.s32 1, %s24
      %p30 = scmp.ge.s32.totalorder %s29, 1
      %s31 = scalar_select %p30, 0, %s29
      %s32 = sadd.s32 1, %s23
      %s33 = scalar_select %p30, %s32, %s23
      %p34 = scmp.ge.s32.totalorder %s33, 2
      %s35 = scalar_select %p34, 0, %s33
      %s36 = ssub.s32 %s23, %s35
      %p37 = scmp.eq.s32.totalorder %s36, 0
      %s39 = sadd.s32 %s38, 1
      %s40 = scalar_select %p37, %s38, %s39
      %p43 = pneg %p37
      %p44 = scmp.eq.s32.totalorder %s16, 1
      %p45 = por %p43, %p44
      %p46 = scmp.ne.s32.totalorder %s38, %s41
      %p47 = scmp.eq.s32.totalorder %s16, 0
      %p48 = por %p46, %p47
      %p49 = scmp.ne.s32.totalorder %s38, %s41
      %p50 = scmp.eq.s32.totalorder %s21, 1
      %p51 = por %p49, %p50
      %p52 = scmp.ne.s32.totalorder %s41, %s42
      %p53 = scmp.eq.s32.totalorder %s21, 0
      %p54 = por %p52, %p53
      %p55 = scmp.ne.s32.totalorder %s41, %s42
      %p56 = scmp.eq.s32.totalorder %s22, 1
      %p57 = por %p55, %p56
      %p59 = scmp.ne.s32.totalorder %s42, %s58
      %p60 = scmp.eq.s32.totalorder %s22, 0
      %p61 = por %p59, %p60
      %s63 = sadd.s32 %s62, 1
      %p66 = scmp.eq.s32.totalorder %s16, 1
      %p67 = scmp.ne.s32.totalorder %s62, %s64
      %p68 = scmp.eq.s32.totalorder %s16, 0
      %p69 = por %p67, %p68
      %p70 = scmp.ne.s32.totalorder %s62, %s64
      %p71 = scmp.eq.s32.totalorder %s21, 1
      %p72 = por %p70, %p71
      %p73 = scmp.ne.s32.totalorder %s64, %s65
      %p74 = scmp.eq.s32.totalorder %s21, 0
      %p75 = por %p73, %p74
      %p76 = scmp.ne.s32.totalorder %s64, %s65
      %p77 = scmp.eq.s32.totalorder %s22, 1
      %p78 = por %p76, %p77
      %p80 = scmp.ne.s32.totalorder %s65, %s79
      %p81 = scmp.eq.s32.totalorder %s22, 0
      %p82 = por %p80, %p81
      %s83 = ssub.s32 %s23, %s35
      %s84 = ssub.s32 %s24, %s31
      %s85 = sor.u32 %s83, %s84
      %p86 = scmp.eq.s32.totalorder %s85, 0
      %s88 = sadd.s32 %s87, 1
      %s89 = scalar_select %p86, %s87, %s88
      %p92 = pneg %p86
      %p93 = scmp.eq.s32.totalorder %s16, 1
      %p94 = por %p92, %p93
      %p95 = scmp.ne.s32.totalorder %s87, %s90
      %p96 = scmp.eq.s32.totalorder %s16, 0
      %p97 = por %p95, %p96
      %p98 = scmp.ne.s32.totalorder %s87, %s90
      %p99 = scmp.eq.s32.totalorder %s21, 1
      %p100 = por %p98, %p99
      %p101 = scmp.ne.s32.totalorder %s90, %s91
      %p102 = scmp.eq.s32.totalorder %s21, 0
      %p103 = por %p101, %p102
      %p104 = scmp.ne.s32.totalorder %s90, %s91
      %p105 = scmp.eq.s32.totalorder %s22, 1
      %p106 = por %p104, %p105
      %p108 = scmp.ne.s32.totalorder %s91, %s107
      %p109 = scmp.eq.s32.totalorder %s22, 0
      %p110 = por %p108, %p109
      %s111 = ssub.s32 %s23, %s35
      %s112 = ssub.s32 %s24, %s31
      %s113 = sor.u32 %s111, %s112
      %p114 = scmp.eq.s32.totalorder %s113, 0
      %s116 = sadd.s32 %s115, 1
      %s117 = scalar_select %p114, %s115, %s116
      %p120 = pneg %p114
      %p121 = scmp.eq.s32.totalorder %s16, 1
      %p122 = por %p120, %p121
      %p123 = scmp.ne.s32.totalorder %s115, %s118
      %p124 = scmp.eq.s32.totalorder %s16, 0
      %p125 = por %p123, %p124
      %p126 = scmp.ne.s32.totalorder %s115, %s118
      %p127 = scmp.eq.s32.totalorder %s21, 1
      %p128 = por %p126, %p127
      %p129 = scmp.ne.s32.totalorder %s118, %s119
      %p130 = scmp.eq.s32.totalorder %s21, 0
      %p131 = por %p129, %p130
      %p132 = scmp.ne.s32.totalorder %s118, %s119
      %p133 = scmp.eq.s32.totalorder %s22, 1
      %p134 = por %p132, %p133
      %p136 = scmp.ne.s32.totalorder %s119, %s135
      %p137 = scmp.eq.s32.totalorder %s22, 0
      %p138 = por %p136, %p137
      %p139 = scmp.le.s32.totalorder 1, %s16
      %p140 = scmp.lt.s32.totalorder %s16, 3
      %p141 = pnand %p139, %p140
      %p142 = pneg %p141
      // Predicated region
      $region9: #{tpu_custom_call.1} parent=5 // pred_check
        _
      $region10: #{tpu_custom_call.1} parent=5 // pred_check_branch
        %144 = sbr.rel (%p141) target = $region12
      $region11: #{tpu_custom_call.1} parent=5 // pred_region
        %s145 = ssub.s32 %s16, 1
        // Predicated region
        $region13: #{tpu_custom_call.1} parent=11 // pred_check
          %p146 = pneg %p75
        $region14: #{tpu_custom_call.1} parent=11 // pred_check_branch
          %148 = sbr.rel (%p146) target = $region16
        $region15: #{tpu_custom_call.1} parent=11 // pred_region
          %s150 = ssub.s32 64, 64
          %151 = vsyncadd [#allocation6], %s150
          %s153 = sshll.u32 [#allocation5], 4
          %s154 = int_to_ptr.vmem [resolvable:$true] %s153
          %156 = dma.hbm_to_vmem [thread:$0]  %s1, 64, %s154, [#allocation6]
        $region16: #{tpu_custom_call.1} parent=11 // pred_fallthru
          _
      $region12: #{tpu_custom_call.1} parent=5 // pred_fallthru
        _
      %p157 = scmp.lt.s32.totalorder %s16, 2
      // Predicated region
      $region17: #{tpu_custom_call.1} parent=5 // pred_check
        %p158 = pneg %p157
      $region18: #{tpu_custom_call.1} parent=5 // pred_check_branch
        %160 = sbr.rel (%p158) target = $region20
      $region19: #{tpu_custom_call.1} parent=5 // pred_region
        // Predicated region
        $region21: #{tpu_custom_call.1} parent=19 // pred_check
          %p161 = pneg %p48
        $region22: #{tpu_custom_call.1} parent=19 // pred_check_branch
          %163 = sbr.rel (%p161) target = $region24
        $region23: #{tpu_custom_call.1} parent=19 // pred_region
          %s164 = sand.u32 %s16, 1
          %s165 = scalar_lea.sflag [#allocation3], %s164
          %s166 = sand.u32 %s38, 1
          %s167 = smul.addr %s166, 4
          %s168 = scalar_lea.vmem [#allocation2], %s167
          %s170 = ssub.s32 64, 64
          %171 = vsyncadd %s165, %s170
          %s172 = smul.addr %s23, 64
          %s173 = scalar_lea.hbm %s0, %s172
          %s175 = sshll.u32 %s168, 4
          %s176 = int_to_ptr.vmem [resolvable:$true] %s175
          %178 = dma.hbm_to_vmem [thread:$0]  %s173, 64, %s176, %s165
        $region24: #{tpu_custom_call.1} parent=19 // pred_fallthru
          _
        // Predicated region
        $region25: #{tpu_custom_call.1} parent=19 // pred_check
          %p179 = pneg %p97
        $region26: #{tpu_custom_call.1} parent=19 // pred_check_branch
          %181 = sbr.rel (%p179) target = $region28
        $region27: #{tpu_custom_call.1} parent=19 // pred_region
          %s182 = sand.u32 %s16, 1
          %s183 = scalar_lea.sflag [#allocation3], %s182
          %s184 = sand.u32 %s87, 1
          %s185 = smul.addr %s184, 8
          %s186 = scalar_lea.vmem [#allocation7], %s185
          %s187 = smul.u32 2, %s24
          %s189 = ssub.s32 128, 128
          %190 = vsyncadd %s183, %s189
          %s191 = smul.addr %s23, 2
          %s192 = sadd.s32 %s187, %s191
          %s193 = smul.addr %s192, 64
          %s194 = scalar_lea.hbm %s2, %s193
          %s196 = sshll.u32 %s186, 4
          %s197 = int_to_ptr.vmem [resolvable:$true] %s196
          %199 = dma.hbm_to_vmem [thread:$0]  %s194, 128, %s197, %s183
        $region28: #{tpu_custom_call.1} parent=19 // pred_fallthru
          _
      $region20: #{tpu_custom_call.1} parent=5 // pred_fallthru
        _
      %p200 = scmp.le.s32.totalorder 1, %s16
      %p201 = scmp.lt.s32.totalorder %s16, 3
      %p202 = pnand %p200, %p201
      %p203 = pneg %p202
      // Predicated region
      $region29: #{tpu_custom_call.1} parent=5 // pred_check
        _
      $region30: #{tpu_custom_call.1} parent=5 // pred_check_branch
        %205 = sbr.rel (%p202) target = $region32
      $region31: #{tpu_custom_call.1} parent=5 // pred_region
        %s206 = ssub.s32 %s16, 1
        %s207 = sand.u32 %s21, 1
        %s208 = scalar_lea.sflag [#allocation3], %s207
        %s209 = sand.u32 %s41, 1
        %s210 = smul.addr %s209, 4
        %s211 = scalar_lea.vmem [#allocation2], %s210
        // Predicated region
        $region33: #{tpu_custom_call.1} parent=31 // pred_check
          %p212 = pneg %p54
        $region34: #{tpu_custom_call.1} parent=31 // pred_check_branch
          %214 = sbr.rel (%p212) target = $region36
        $region35: #{tpu_custom_call.1} parent=31 // pred_region
          %215 = dma.done %s208, 64
        $region36: #{tpu_custom_call.1} parent=31 // pred_fallthru
          _
        // Predicated region
        $region37: #{tpu_custom_call.1} parent=31 // pred_check
          %p216 = pneg %p75
        $region38: #{tpu_custom_call.1} parent=31 // pred_check_branch
          %218 = sbr.rel (%p216) target = $region40
        $region39: #{tpu_custom_call.1} parent=31 // pred_region
          %219 = dma.done [#allocation6], 64
        $region40: #{tpu_custom_call.1} parent=31 // pred_fallthru
          _
        %s220 = sand.u32 %s21, 1
        %s221 = scalar_lea.sflag [#allocation3], %s220
        %s222 = sand.u32 %s90, 1
        %s223 = smul.addr %s222, 8
        %s224 = scalar_lea.vmem [#allocation7], %s223
        // Predicated region
        $region41: #{tpu_custom_call.1} parent=31 // pred_check
          %p225 = pneg %p103
        $region42: #{tpu_custom_call.1} parent=31 // pred_check_branch
          %227 = sbr.rel (%p225) target = $region44
        $region43: #{tpu_custom_call.1} parent=31 // pred_region
          %228 = dma.done %s221, 128
        $region44: #{tpu_custom_call.1} parent=31 // pred_fallthru
          _
        %s229 = sand.u32 %s21, 1
        %s230 = scalar_lea.sflag [#allocation3], %s229
        %s231 = sand.u32 %s41, 1
        %s232 = smul.addr %s231, 4
        %s233 = scalar_lea.vmem [#allocation2], %s232
        %p234 = pneg %p54
        %p235 = pneg %p51
        %p236 = pneg %p75
        %p237 = pneg %p72
        %s238 = sand.u32 %s21, 1
        %s239 = scalar_lea.sflag [#allocation3], %s238
        %s240 = sand.u32 %s90, 1
        %s241 = smul.addr %s240, 8
        %s242 = scalar_lea.vmem [#allocation7], %s241
        %p243 = pneg %p103
        %p244 = pneg %p100
        %p245 = pneg %p131
        %p246 = pneg %p128
        %s247 = sand.u32 %s118, 1
        %s248 = scalar_lea.sflag [#allocation4], %s247
        %s249 = sand.u32 %s118, 1
        %s250 = smul.addr %s249, 8
        %s251 = scalar_lea.vmem [#allocation8], %s250
        %s252 = smul.u32 2, %s26
        %s253 = smul.u32 2, %s26
        %v254 = vld [vmem:[%s211] sm:$0x7]
        %v255 = vld [vmem:[%s224] sm:$0xff]
        %v256 = vld [vmem:[#allocation5] sm:$0x7]
        %258 = vset.pattern.permute.xlu0 0
        %259 = vperm.xlu0 %258, %v256
        %v260 = vpop.permute.xlu0 %259
        %v263 = vcombine.high %v255, %v255
        %vm264 = vcmask 31744
        %v266 = vsel %vm264, %v254, 0
        %vm268 = vcmask 1043456
        %v269 = vsel %vm268, %v255, 0
        %v271 = vsel %vm268, %v263, 0
        %273 = vmatprep.subr.mxu0 %v271
        %274 = vmatpush1.msra.mxu0 %v269
        %275 = vmatprep.subr.mxu0 0.0
        %276 = vmatpush1.msra.mxu0 0.0
        %277 = vmatprep.subr.mxu0 0.0
        %278 = vmatpush1.msra.mxu0 0.0
        %279 = vmatprep.subr.mxu0 0.0
        %280 = vmatpush1.msra.mxu0 0.0
        %281 = vmatprep.subr.mxu0 0.0
        %282 = vmatpush1.msra.mxu0 0.0
        %283 = vmatprep.subr.mxu0 0.0
        %284 = vmatpush1.msra.mxu0 0.0
        %285 = vmatprep.subr.mxu0 0.0
        %286 = vmatpush1.msra.mxu0 0.0
        %287 = vmatprep.subr.mxu0 0.0
        %288 = vmatpush1.msra.mxu0 0.0
        %289 = vmatprep.subr.mxu0 0.0
        %290 = vmatpush1.msra.mxu0 0.0
        %291 = vmatprep.subr.mxu0 0.0
        %292 = vmatpush1.msra.mxu0 0.0
        %293 = vmatprep.subr.mxu0 0.0
        %294 = vmatpush1.msra.mxu0 0.0
        %295 = vmatprep.subr.mxu0 0.0
        %296 = vmatpush1.msra.mxu0 0.0
        %297 = vmatprep.subr.mxu0 0.0
        %298 = vmatpush1.msra.mxu0 0.0
        %299 = vmatprep.subr.mxu0 0.0
        %300 = vmatpush1.msra.mxu0 0.0
        %301 = vmatprep.subr.mxu0 0.0
        %302 = vmatpush1.msra.mxu0 0.0
        %303 = vmatprep.subr.mxu0 0.0
        %304 = vmatpush1.msra.mxu0 0.0
        %305 = vmatprep.subr.mxu0 0.0
        %306 = vmatpush1.msra.mxu0 0.0
        %307 = vmatprep.subr.mxu0 0.0
        %308 = vmatpush1.msra.mxu0 0.0
        %309 = vmatprep.subr.mxu0 0.0
        %310 = vmatpush1.msra.mxu0 0.0
        %311 = vmatprep.subr.mxu0 0.0
        %312 = vmatpush1.msra.mxu0 0.0
        %313 = vmatprep.subr.mxu0 0.0
        %314 = vmatpush1.msra.mxu0 0.0
        %315 = vmatprep.subr.mxu0 0.0
        %316 = vmatpush1.msra.mxu0 0.0
        %317 = vmatprep.subr.mxu0 0.0
        %318 = vmatpush1.msra.mxu0 0.0
        %319 = vmatprep.subr.mxu0 0.0
        %320 = vmatpush1.msra.mxu0 0.0
        %321 = vmatprep.subr.mxu0 0.0
        %322 = vmatpush1.msra.mxu0 0.0
        %323 = vmatprep.subr.mxu0 0.0
        %324 = vmatpush1.msra.mxu0 0.0
        %325 = vmatprep.subr.mxu0 0.0
        %326 = vmatpush1.msra.mxu0 0.0
        %327 = vmatprep.subr.mxu0 0.0
        %328 = vmatpush1.msra.mxu0 0.0
        %329 = vmatprep.subr.mxu0 0.0
        %330 = vmatpush1.msra.mxu0 0.0
        %331 = vmatprep.subr.mxu0 0.0
        %332 = vmatpush1.msra.mxu0 0.0
        %333 = vmatprep.subr.mxu0 0.0
        %334 = vmatpush1.msra.mxu0 0.0
        %335 = vmatprep.subr.mxu0 0.0
        %336 = vmatpush1.msra.mxu0 0.0
        %337 = vmatprep.mubr.f32.mxu0 0.0
        %338 = vmatmul.mubr.f32.gmra.mrb[0].mxu0 %v266
        %v339 = vpop.f32.mrb[0].mxu0
        %v340 = vadd.f32 %v260, %v339
        %v341 = vpop.f32.mrb[0].mxu0
        %v342 = vadd.f32 %v260, %v341
        %343 = vdwg.mxu0
        %vm344 = vcmp.ge.f32.partialorder %v340, 0.0
        %vm345 = vcmp.ge.f32.partialorder %v342, 0.0
        %v346 = vmul.f32 %v340, 0.01
        %v347 = vmul.f32 %v342, 0.01
        %v348 = vsel %vm344, %v340, %v346
        %v349 = vsel %vm345, %v342, %v347
        %v352 = vcombine.low %v348, %v349
        %354 = vst [vmem:[%s251] sm:$0x77] %v352
        %s355 = sand.u32 %s118, 1
        %s356 = scalar_lea.sflag [#allocation4], %s355
        %s357 = sand.u32 %s118, 1
        %s358 = smul.addr %s357, 8
        %s359 = scalar_lea.vmem [#allocation8], %s358
        // Predicated region
        $region45: #{tpu_custom_call.1} parent=31 // pred_check
          %p360 = pneg %p128
        $region46: #{tpu_custom_call.1} parent=31 // pred_check_branch
          %362 = sbr.rel (%p360) target = $region48
        $region47: #{tpu_custom_call.1} parent=31 // pred_region
          %s363 = smul.u32 2, %s26
          %s365 = ssub.s32 128, 128
          %366 = vsyncadd %s356, %s365
          %s367 = smul.addr %s25, 2
          %s368 = sadd.s32 %s363, %s367
          %s369 = smul.addr %s368, 64
          %s370 = scalar_lea.hbm %s3, %s369
          %s372 = sshll.u32 %s359, 4
          %s373 = int_to_ptr.vmem [resolvable:$true] %s372
          %375 = dma.vmem_to_hbm [thread:$0]  %s373, 128, %s370, %s356
        $region48: #{tpu_custom_call.1} parent=31 // pred_fallthru
          _
      $region32: #{tpu_custom_call.1} parent=5 // pred_fallthru
        _
      %p376 = scmp.le.s32.totalorder 2, %s16
      // Predicated region
      $region49: #{tpu_custom_call.1} parent=5 // pred_check
        %p377 = pneg %p376
      $region50: #{tpu_custom_call.1} parent=5 // pred_check_branch
        %379 = sbr.rel (%p377) target = $region52
      $region51: #{tpu_custom_call.1} parent=5 // pred_region
        %s380 = ssub.s32 %s16, 2
        // Predicated region
        $region53: #{tpu_custom_call.1} parent=51 // pred_check
          %p381 = pneg %p134
        $region54: #{tpu_custom_call.1} parent=51 // pred_check_branch
          %383 = sbr.rel (%p381) target = $region56
        $region55: #{tpu_custom_call.1} parent=51 // pred_region
          %s384 = sand.u32 %s119, 1
          %s385 = scalar_lea.sflag [#allocation4], %s384
          %s386 = sand.u32 %s119, 1
          %s387 = smul.addr %s386, 8
          %s388 = scalar_lea.vmem [#allocation8], %s387
          %389 = dma.done %s385, 128
        $region56: #{tpu_custom_call.1} parent=51 // pred_fallthru
          _
      $region52: #{tpu_custom_call.1} parent=5 // pred_fallthru
        _
    $region6: #{tpu_custom_call.1} parent=1 // loop_footer
      %s20 = sadd.s32 1, %s16
    $region7: #{tpu_custom_call.1} parent=1 // loop_footer_branch
      %15 = sbr.rel target = $region3
    $region8: #{tpu_custom_call.1} parent=1 // loop_exit
      _
    %390 = vsyncpa [#allocation3], 1
    %s391 = scalar_lea.sflag [#allocation3], 1
    %392 = vsyncpa %s391, 1
    %393 = vsyncpa [#allocation6], 1
    %394 = vsyncpa [#allocation4], 1
    %s395 = scalar_lea.sflag [#allocation4], 1
    %396 = vsyncpa %s395, 1

</llo_original>
